<compile_context>
chip_gen: v6e
topology: v6e:2x2x1
jax: 0.10.0
libtpu: 0.0.40
codegen_flags: <defaults>
</compile_context>

<pallas_src>
from typing import NamedTuple

import jax
import jax.numpy as jnp
from jax.experimental import pallas as pl
from jax.experimental.pallas import tpu as pltpu

LANE = 128                  # TPU vreg lane width
_MAX_BLOCK_BATCH = 512      # rows per grid step when the batch must be tiled


class PolicyParams(NamedTuple):
    w1: jax.Array
    b1: jax.Array
    w2: jax.Array
    b2: jax.Array
    w3: jax.Array   # std folded in, output dim padded to a lane multiple
    b3: jax.Array   # std folded in, output dim padded to a lane multiple
    ac_dim: int     # true (unpadded) action dimension


def _mlp_policy_kernel(x_ref, w1_ref, b1_ref, w2_ref, b2_ref, w3_ref, b3_ref,
                       out_ref):
    """Fused 3-layer MLP: x @ W1 -> tanh -> @ W2 -> tanh -> @ W3 (std folded)."""
    w_dtype = w1_ref.dtype                      # f32 or bf16 compute dtype
    x = x_ref[...].astype(w_dtype)              # VPU cast; MXU accumulates in f32
    h = jnp.dot(x, w1_ref[...], preferred_element_type=jnp.float32) + b1_ref[...]
    h = jnp.tanh(h)                             # tanh on the f32 accumulator (EUP)
    h = jnp.dot(h.astype(w_dtype), w2_ref[...],
                preferred_element_type=jnp.float32) + b2_ref[...]
    h = jnp.tanh(h)
    out = jnp.dot(h.astype(w_dtype), w3_ref[...],
                  preferred_element_type=jnp.float32) + b3_ref[...]
    out_ref[...] = out.astype(out_ref.dtype)    # lane-dense store (padded ac dim)


def prepare_params(raw_params, *, compute_dtype=jnp.float32):
    """One-time host-side parameter transform.

    - Folds std into the final affine layer (exact: std is per output column).
    - Zero-pads the output feature dim to a multiple of 128 (lane-dense stores).
    - Casts weights to `compute_dtype` (bfloat16 recommended on v6e/v7x);
      biases stay f32 since they are added to the f32 accumulator.
    """
    w1, b1, w2, b2, w3, b3, std = raw_params
    ac_dim = w3.shape[1]

    w3 = w3 * std            # (hidden, ac_dim) * (1, ac_dim)  -> exact fold
    b3 = b3 * std

    ac_pad = ((ac_dim + LANE - 1) // LANE) * LANE
    if ac_pad != ac_dim:
        w3 = jnp.pad(w3, ((0, 0), (0, ac_pad - ac_dim)))
        b3 = jnp.pad(b3, ((0, 0), (0, ac_pad - ac_dim)))

    return PolicyParams(
        w1.astype(compute_dtype), b1.astype(jnp.float32),
        w2.astype(compute_dtype), b2.astype(jnp.float32),
        w3.astype(compute_dtype), b3.astype(jnp.float32),
        ac_dim,
    )


def mlp_policy_forward(obs, params: PolicyParams, *,
                       max_block_batch=_MAX_BLOCK_BATCH):
    """obs: (B, ob_dim) float32. Returns (B, ac_dim) float32."""
    w1, b1, w2, b2, w3, b3, ac_dim = params
    B, ob_dim = obs.shape
    hidden = w1.shape[1]
    ac_pad = w3.shape[1]

    # Single grid step for the whole batch when it fits; otherwise large tiles
    # (>= 512 rows) so per-step overhead and masked edges are amortized.
    if B <= max_block_batch:
        block_batch, b_pad = B, B
        x = obs
    else:
        block_batch = max_block_batch
        b_pad = pl.cdiv(B, block_batch) * block_batch
        x = jnp.pad(obs, ((0, b_pad - B), (0, 0))) if b_pad != B else obs

    grid = (b_pad // block_batch,)
    const_map = lambda i: (0, 0)   # parameters: same block every grid step

    in_specs = [
        pl.BlockSpec((block_batch, ob_dim), lambda i: (i, 0)),  # obs tile
        pl.BlockSpec((ob_dim, hidden),      const_map),         # w1
        pl.BlockSpec((1, hidden),           const_map),         # b1
        pl.BlockSpec((hidden, hidden),      const_map),         # w2
        pl.BlockSpec((1, hidden),           const_map),         # b2
        pl.BlockSpec((hidden, ac_pad),      const_map),         # w3 (std folded)
        pl.BlockSpec((1, ac_pad),           const_map),         # b3 (std folded)
    ]
    out_specs = pl.BlockSpec((block_batch, ac_pad), lambda i: (i, 0))

    weight_bytes = sum(int(a.size) * a.dtype.itemsize
                       for a in (w1, b1, w2, b2, w3, b3))
    cost = pl.CostEstimate(
        flops=2 * b_pad * (ob_dim * hidden + hidden * hidden + hidden * ac_pad),
        transcendentals=2 * b_pad * hidden,
        bytes_accessed=int(x.size) * x.dtype.itemsize + weight_bytes
                       + b_pad * ac_pad * 4,
    )

    out = pl.pallas_call(
        _mlp_policy_kernel,
        out_shape=jax.ShapeDtypeStruct((b_pad, ac_pad), jnp.float32),
        grid_spec=pltpu.PrefetchScalarGridSpec(
            num_scalar_prefetch=0,
            grid=grid,
            in_specs=in_specs,
            out_specs=out_specs,
        ),
        compiler_params=pltpu.CompilerParams(
            dimension_semantics=("parallel",)),   # v7x: 2 TCs share the batch axis
        cost_estimate=cost,
    )(x, w1, b1, w2, b2, w3, b3)

    # Drop batch padding and the lane-padding of the action dimension.
    return out[:B, :ac_dim]


def init_params(key, ob_dim, hidden, ac_dim):
    """Mimics PyTorch nn.Linear default init (uniform +-1/sqrt(fan_in)).

    Weights are stored (in_features, out_features) so the kernel computes
    x @ W + b, equivalent to PyTorch's x @ W.T + b with (out, in) weights.
    """
    ks = jax.random.split(key, 6)

    def lin(kw, kb, fan_in, fan_out):
        bound = 1.0 / jnp.sqrt(fan_in)
        w = jax.random.uniform(kw, (fan_in, fan_out), jnp.float32, -bound, bound)
        b = jax.random.uniform(kb, (1, fan_out), jnp.float32, -bound, bound)
        return w, b

    w1, b1 = lin(ks[0], ks[1], ob_dim, hidden)
    w2, b2 = lin(ks[2], ks[3], hidden, hidden)
    w3, b3 = lin(ks[4], ks[5], hidden, ac_dim)
    std = 0.1 * jnp.ones((1, ac_dim), jnp.float32)   # nn.Parameter(ones * 0.1)
    return (w1, b1, w2, b2, w3, b3, std)


def reference_forward(obs, raw_params):
    w1, b1, w2, b2, w3, b3, std = raw_params
    h1 = jnp.tanh(obs @ w1 + b1)
    h2 = jnp.tanh(h1 @ w2 + b2)
    return std * (h2 @ w3 + b3)


if __name__ == "__main__":
    key = jax.random.PRNGKey(0)
    k_obs, k_params, k_obs2 = jax.random.split(key, 3)

    ob_dim, hidden, ac_dim = 16, 32, 8
    raw = init_params(k_params, ob_dim, hidden, ac_dim)

    # 1) Small batch, f32 weights: single grid step, tight check.
    B = 16
    obs = jax.random.normal(k_obs, (B, ob_dim), jnp.float32)
    params_f32 = prepare_params(raw, compute_dtype=jnp.float32)
    out = jax.block_until_ready(mlp_policy_forward(obs, params_f32))
    ref = reference_forward(obs, raw)
    assert out.shape == (B, ac_dim)
    assert jnp.allclose(out, ref, atol=1e-5, rtol=1e-5)

    # 2) Ragged large batch, f32: exercises batch tiling + padding + slicing.
    B2 = 1040
    obs2 = jax.random.normal(k_obs2, (B2, ob_dim), jnp.float32)
    out2 = jax.block_until_ready(
        mlp_policy_forward(obs2, params_f32, max_block_batch=512))
    ref2 = reference_forward(obs2, raw)
    assert out2.shape == (B2, ac_dim)
    assert jnp.allclose(out2, ref2, atol=1e-4, rtol=1e-4)

    # 3) bf16 weights (recommended compute dtype on v6e/v7x): loose check.
    params_bf16 = prepare_params(raw, compute_dtype=jnp.bfloat16)
    out3 = jax.block_until_ready(mlp_policy_forward(obs, params_bf16))
    assert jnp.allclose(out3, ref, atol=5e-2, rtol=5e-2)

    # TODO(synk): the discrete branch returns a torch Categorical distribution
    # object (and the module also owns optimizers / save()); only the mean /
    # logits compute has a Pallas equivalent.
    print("KERNEL_OK")
</pallas_src>

<mosaic_0001>
module attributes {stable_mosaic.version = 11 : i64} {
  func.func @_mlp_policy_kernel(%arg0: i32, %arg1: memref<16x16xf32, #tpu.memory_space<vmem>>, %arg2: memref<16x32xf32, #tpu.memory_space<vmem>>, %arg3: memref<1x32xf32, #tpu.memory_space<vmem>>, %arg4: memref<32x32xf32, #tpu.memory_space<vmem>>, %arg5: memref<1x32xf32, #tpu.memory_space<vmem>>, %arg6: memref<32x128xf32, #tpu.memory_space<vmem>>, %arg7: memref<1x128xf32, #tpu.memory_space<vmem>>, %arg8: memref<16x128xf32, #tpu.memory_space<vmem>>) attributes {dimension_semantics = [#tpu.dimension_semantics<parallel>], iteration_bounds = array<i64: 1>, scalar_prefetch = 0 : i64, scratch_operands = 0 : i64, tpu.core_type = #tpu.core_type<tc>, window_params = [{transform_indices = @transform_0, window_bounds = array<i64: 16, 16>}, {pipeline_mode = #tpu.pipeline_mode<synchronous>, transform_indices = @transform_1, window_bounds = array<i64: 16, 32>}, {pipeline_mode = #tpu.pipeline_mode<synchronous>, transform_indices = @transform_2, window_bounds = array<i64: 1, 32>}, {pipeline_mode = #tpu.pipeline_mode<synchronous>, transform_indices = @transform_3, window_bounds = array<i64: 32, 32>}, {pipeline_mode = #tpu.pipeline_mode<synchronous>, transform_indices = @transform_4, window_bounds = array<i64: 1, 32>}, {pipeline_mode = #tpu.pipeline_mode<synchronous>, transform_indices = @transform_5, window_bounds = array<i64: 32, 128>}, {pipeline_mode = #tpu.pipeline_mode<synchronous>, transform_indices = @transform_6, window_bounds = array<i64: 1, 128>}, {transform_indices = @transform_7, window_bounds = array<i64: 16, 128>}]} {
    %c0 = arith.constant 0 : index
    %c0_0 = arith.constant 0 : index
    %0 = vector.load %arg1[%c0, %c0_0] : memref<16x16xf32, #tpu.memory_space<vmem>>, vector<16x16xf32>
    %c0_1 = arith.constant 0 : index
    %c0_2 = arith.constant 0 : index
    %1 = vector.load %arg2[%c0_1, %c0_2] : memref<16x32xf32, #tpu.memory_space<vmem>>, vector<16x32xf32>
    %cst = arith.constant dense<0.000000e+00> : vector<16x32xf32>
    %2 = tpu.matmul %0, %1, %cst {dimension_numbers = #tpu.dot_dimension_numbers<[1], [0], [0], [1], [0, 0, 1, 1], [], []>} : vector<16x16xf32>, vector<16x32xf32>, vector<16x32xf32> -> vector<16x32xf32>
    %c0_3 = arith.constant 0 : index
    %c0_4 = arith.constant 0 : index
    %3 = vector.load %arg3[%c0_3, %c0_4] : memref<1x32xf32, #tpu.memory_space<vmem>>, vector<1x32xf32>
    %4 = vector.broadcast %3 : vector<1x32xf32> to vector<16x32xf32>
    %5 = arith.addf %2, %4 : vector<16x32xf32>
    %6 = math.tanh %5 : vector<16x32xf32>
    %c0_5 = arith.constant 0 : index
    %c0_6 = arith.constant 0 : index
    %7 = vector.load %arg4[%c0_5, %c0_6] : memref<32x32xf32, #tpu.memory_space<vmem>>, vector<32x32xf32>
    %cst_7 = arith.constant dense<0.000000e+00> : vector<16x32xf32>
    %8 = tpu.matmul %6, %7, %cst_7 {dimension_numbers = #tpu.dot_dimension_numbers<[1], [0], [0], [1], [0, 0, 1, 1], [], []>} : vector<16x32xf32>, vector<32x32xf32>, vector<16x32xf32> -> vector<16x32xf32>
    %c0_8 = arith.constant 0 : index
    %c0_9 = arith.constant 0 : index
    %9 = vector.load %arg5[%c0_8, %c0_9] : memref<1x32xf32, #tpu.memory_space<vmem>>, vector<1x32xf32>
    %10 = vector.broadcast %9 : vector<1x32xf32> to vector<16x32xf32>
    %11 = arith.addf %8, %10 : vector<16x32xf32>
    %12 = math.tanh %11 : vector<16x32xf32>
    %c0_10 = arith.constant 0 : index
    %c0_11 = arith.constant 0 : index
    %13 = vector.load %arg6[%c0_10, %c0_11] : memref<32x128xf32, #tpu.memory_space<vmem>>, vector<32x128xf32>
    %cst_12 = arith.constant dense<0.000000e+00> : vector<16x128xf32>
    %14 = tpu.matmul %12, %13, %cst_12 {dimension_numbers = #tpu.dot_dimension_numbers<[1], [0], [0], [1], [0, 0, 1, 1], [], []>} : vector<16x32xf32>, vector<32x128xf32>, vector<16x128xf32> -> vector<16x128xf32>
    %c0_13 = arith.constant 0 : index
    %c0_14 = arith.constant 0 : index
    %15 = vector.load %arg7[%c0_13, %c0_14] : memref<1x128xf32, #tpu.memory_space<vmem>>, vector<1x128xf32>
    %16 = vector.broadcast %15 : vector<1x128xf32> to vector<16x128xf32>
    %17 = arith.addf %14, %16 : vector<16x128xf32>
    %c0_15 = arith.constant 0 : index
    %c0_16 = arith.constant 0 : index
    %18 = vector.load %arg8[%c0_15, %c0_16] : memref<16x128xf32, #tpu.memory_space<vmem>>, vector<16x128xf32>
    tpu.vector_store %arg8[%c0_15, %c0_16], %17 {strides = array<i32>} : memref<16x128xf32, #tpu.memory_space<vmem>>, vector<16x128xf32>,
    return
  }
  func.func @transform_0(%arg0: i32) -> (i32, i32) {
    %c0_i32 = arith.constant 0 : i32
    %c0_i32_0 = arith.constant 0 : i32
    return %arg0, %c0_i32 : i32, i32
  }
  func.func @transform_1(%arg0: i32) -> (i32, i32) {
    %c0_i32 = arith.constant 0 : i32
    %c0_i32_0 = arith.constant 0 : i32
    %c0_i32_1 = arith.constant 0 : i32
    return %c0_i32, %c0_i32_0 : i32, i32
  }
  func.func @transform_2(%arg0: i32) -> (i32, i32) {
    %c0_i32 = arith.constant 0 : i32
    %c0_i32_0 = arith.constant 0 : i32
    %c0_i32_1 = arith.constant 0 : i32
    return %c0_i32, %c0_i32_0 : i32, i32
  }
  func.func @transform_3(%arg0: i32) -> (i32, i32) {
    %c0_i32 = arith.constant 0 : i32
    %c0_i32_0 = arith.constant 0 : i32
    %c0_i32_1 = arith.constant 0 : i32
    return %c0_i32, %c0_i32_0 : i32, i32
  }
  func.func @transform_4(%arg0: i32) -> (i32, i32) {
    %c0_i32 = arith.constant 0 : i32
    %c0_i32_0 = arith.constant 0 : i32
    %c0_i32_1 = arith.constant 0 : i32
    return %c0_i32, %c0_i32_0 : i32, i32
  }
  func.func @transform_5(%arg0: i32) -> (i32, i32) {
    %c0_i32 = arith.constant 0 : i32
    %c0_i32_0 = arith.constant 0 : i32
    %c0_i32_1 = arith.constant 0 : i32
    return %c0_i32, %c0_i32_0 : i32, i32
  }
  func.func @transform_6(%arg0: i32) -> (i32, i32) {
    %c0_i32 = arith.constant 0 : i32
    %c0_i32_0 = arith.constant 0 : i32
    %c0_i32_1 = arith.constant 0 : i32
    return %c0_i32, %c0_i32_0 : i32, i32
  }
  func.func @transform_7(%arg0: i32) -> (i32, i32) {
    %c0_i32 = arith.constant 0 : i32
    %c0_i32_0 = arith.constant 0 : i32
    return %arg0, %c0_i32 : i32, i32
  }
}

</mosaic_0001>

<llo_original>
// kernel: tpu_custom_call.1
$region0: #{tpu_custom_call.1}
  #allocation0 [shape = 'u32[]', space=smem, size = 0x4, offset = 0x4, fixed_abs, tag = 'smem constant byte address 0x4 - core index']
  #allocation1 [shape = 'u32[144,128]{1,0:T(1,128)}', space=vmem, size = 0x12000, scoped, tag = 'internal scratch']
  %s0 = inlined_call_operand.hbm [shape: f32[16,16], index: 0, kind: input, shape index: {}]
  %s1 = inlined_call_operand.hbm [shape: f32[16,32], index: 1, kind: input, shape index: {}]
  %s2 = inlined_call_operand.vmem [shape: f32[1,32], index: 2, kind: input, shape index: {}]
  %s3 = inlined_call_operand.hbm [shape: f32[32,32], index: 3, kind: input, shape index: {}]
  %s4 = inlined_call_operand.vmem [shape: f32[1,32], index: 4, kind: input, shape index: {}]
  %s5 = inlined_call_operand.hbm [shape: f32[32,128], index: 5, kind: input, shape index: {}]
  %s6 = inlined_call_operand.vmem [shape: f32[1,128], index: 6, kind: input, shape index: {}]
  %s7 = inlined_call_operand.hbm [shape: f32[16,128], index: 7, kind: output, shape index: {}]
  %s8 = sld [smem:[#allocation0]]
  $region54: #{tpu_custom_call.1} parent=0
    _
  %s10 = ssub.s32 1, %s8
  %s11 = scalar_select 0, %s10, %s8
  $region1: #{tpu_custom_call.1} parent=0
    #allocation2 [shape = 'u8[8192]{0}', space=vmem, size = 0x2000, scoped, tag = 'input window, operand 0, single buffered']
    #allocation3 [shape = 's32[1]{0}', space=sflag, size = 0x4, scoped, tag = 'scoped memory for tpu_custom_call.1']
    #allocation4 [shape = 's32[1]{0}', space=sflag, size = 0x4, scoped, tag = 'scoped memory for tpu_custom_call.1']
    #allocation5 [shape = 'u8[8192]{0}', space=vmem, size = 0x2000, scoped, tag = 'input window, operand 1, single buffered']
    #allocation6 [shape = 's32[1]{0}', space=sflag, size = 0x4, scoped, tag = 'scoped memory for tpu_custom_call.1']
    #allocation7 [shape = 'u8[16384]{0}', space=vmem, size = 0x4000, scoped, tag = 'input window, operand 3, single buffered']
    #allocation8 [shape = 'u8[16384]{0}', space=vmem, size = 0x4000, scoped, tag = 'input window, operand 5, single buffered']
    #allocation9 [shape = 's32[1]{0}', space=sflag, size = 0x4, scoped, tag = 'scoped memory for tpu_custom_call.1']
    #allocation10 [shape = 'u8[8192]{0}', space=vmem, size = 0x2000, scoped, tag = 'output window, operand 0, single buffered']
    %12 = vsyncpa [#allocation3], 0
    %13 = vsyncpa [#allocation6], 0
    %14 = vsyncpa [#allocation9], 0
    %15 = vsyncpa [#allocation4], 0
    // Predicated region
    $region2: #{tpu_custom_call.1} parent=1 // pred_check
      _
    $region3: #{tpu_custom_call.1} parent=1 // pred_check_branch
      %17 = sbr.rel (0) target = $region5
    $region4: #{tpu_custom_call.1} parent=1 // pred_region
      %s19 = ssub.s32 256, 256
      %20 = vsyncadd [#allocation3], %s19
      %s21 = sshll.u32 [#allocation2], 4
      %s22 = int_to_ptr.vmem [resolvable:$true] %s21
      %27 = dma.hbm_to_vmem [thread:$0]  %s0, 256, %s22, [#allocation3], 128, 128, 8
    $region5: #{tpu_custom_call.1} parent=1 // pred_fallthru
      _
    // Predicated region
    $region6: #{tpu_custom_call.1} parent=1 // pred_check
      _
    $region7: #{tpu_custom_call.1} parent=1 // pred_check_branch
      %29 = sbr.rel (0) target = $region9
    $region8: #{tpu_custom_call.1} parent=1 // pred_region
      %s31 = ssub.s32 256, 256
      %32 = vsyncadd [#allocation6], %s31
      %s33 = sshll.u32 [#allocation5], 4
      %s34 = int_to_ptr.vmem [resolvable:$true] %s33
      %39 = dma.hbm_to_vmem [thread:$0]  %s1, 256, %s34, [#allocation6], 128, 128, 8
    $region9: #{tpu_custom_call.1} parent=1 // pred_fallthru
      _
    // Predicated region
    $region10: #{tpu_custom_call.1} parent=1 // pred_check
      _
    $region11: #{tpu_custom_call.1} parent=1 // pred_check_branch
      %41 = sbr.rel (0) target = $region13
    $region12: #{tpu_custom_call.1} parent=1 // pred_region
      _
    $region13: #{tpu_custom_call.1} parent=1 // pred_fallthru
      _
    // Predicated region
    $region14: #{tpu_custom_call.1} parent=1 // pred_check
      _
    $region15: #{tpu_custom_call.1} parent=1 // pred_check_branch
      %43 = sbr.rel (0) target = $region17
    $region16: #{tpu_custom_call.1} parent=1 // pred_region
      %s45 = ssub.s32 512, 512
      %46 = vsyncadd [#allocation6], %s45
      %s47 = sshll.u32 [#allocation7], 4
      %s48 = int_to_ptr.vmem [resolvable:$true] %s47
      %53 = dma.hbm_to_vmem [thread:$0]  %s3, 512, %s48, [#allocation6], 128, 128, 8
    $region17: #{tpu_custom_call.1} parent=1 // pred_fallthru
      _
    // Predicated region
    $region18: #{tpu_custom_call.1} parent=1 // pred_check
      _
    $region19: #{tpu_custom_call.1} parent=1 // pred_check_branch
      %55 = sbr.rel (0) target = $region21
    $region20: #{tpu_custom_call.1} parent=1 // pred_region
      _
    $region21: #{tpu_custom_call.1} parent=1 // pred_fallthru
      _
    // Predicated region
    $region22: #{tpu_custom_call.1} parent=1 // pred_check
      _
    $region23: #{tpu_custom_call.1} parent=1 // pred_check_branch
      %57 = sbr.rel (0) target = $region25
    $region24: #{tpu_custom_call.1} parent=1 // pred_region
      %s59 = ssub.s32 512, 512
      %60 = vsyncadd [#allocation9], %s59
      %s61 = sshll.u32 [#allocation8], 4
      %s62 = int_to_ptr.vmem [resolvable:$true] %s61
      %67 = dma.hbm_to_vmem [thread:$0]  %s5, 512, %s62, [#allocation9], 128, 128, 8
    $region25: #{tpu_custom_call.1} parent=1 // pred_fallthru
      _
    // Predicated region
    $region26: #{tpu_custom_call.1} parent=1 // pred_check
      _
    $region27: #{tpu_custom_call.1} parent=1 // pred_check_branch
      %69 = sbr.rel (0) target = $region29
    $region28: #{tpu_custom_call.1} parent=1 // pred_region
      _
    $region29: #{tpu_custom_call.1} parent=1 // pred_fallthru
      _
    // Predicated region
    $region30: #{tpu_custom_call.1} parent=1 // pred_check
      _
    $region31: #{tpu_custom_call.1} parent=1 // pred_check_branch
      %71 = sbr.rel (0) target = $region33
    $region32: #{tpu_custom_call.1} parent=1 // pred_region
      %72 = dma.done [#allocation3], 256
    $region33: #{tpu_custom_call.1} parent=1 // pred_fallthru
      _
    // Predicated region
    $region34: #{tpu_custom_call.1} parent=1 // pred_check
      _
    $region35: #{tpu_custom_call.1} parent=1 // pred_check_branch
      %74 = sbr.rel (0) target = $region37
    $region36: #{tpu_custom_call.1} parent=1 // pred_region
      %75 = dma.done [#allocation6], 256
    $region37: #{tpu_custom_call.1} parent=1 // pred_fallthru
      _
    // Predicated region
    $region38: #{tpu_custom_call.1} parent=1 // pred_check
      _
    $region39: #{tpu_custom_call.1} parent=1 // pred_check_branch
      %77 = sbr.rel (0) target = $region41
    $region40: #{tpu_custom_call.1} parent=1 // pred_region
      %78 = dma.done [#allocation6], 512
    $region41: #{tpu_custom_call.1} parent=1 // pred_fallthru
      _
    // Predicated region
    $region42: #{tpu_custom_call.1} parent=1 // pred_check
      _
    $region43: #{tpu_custom_call.1} parent=1 // pred_check_branch
      %80 = sbr.rel (0) target = $region45
    $region44: #{tpu_custom_call.1} parent=1 // pred_region
      %81 = dma.done [#allocation9], 512
    $region45: #{tpu_custom_call.1} parent=1 // pred_fallthru
      _
    %v82 = vld [vmem:[#allocation2] sm:$0xff]
    %v83 = vld [vmem:[#allocation2 + $0x8] sm:$0xff]
    %v84 = vld [vmem:[#allocation5] sm:$0xff]
    %v85 = vld [vmem:[#allocation5 + $0x8] sm:$0xff]
    %v86 = vld [vmem:[%s2] sm:$0x1]
    %v88 = vlaneseq
    %v89 = vshrl.u32 %v88, 7
    %v90 = vsub.s32 0, %v89
    %v91 = vrot.slane %v86, %v90
    %vm93 = vcmask 130048
    %v95 = vsel %vm93, %v82, 0
    %v98 = vsel %vm93, %v83, 0
    %100 = vmatprep.subr.mxu0 0.0
    %101 = vmatpush1.msra.mxu0 0.0
    %102 = vmatprep.subr.mxu0 0.0
    %103 = vmatpush1.msra.mxu0 0.0
    %104 = vmatprep.subr.mxu0 0.0
    %105 = vmatpush1.msra.mxu0 0.0
    %106 = vmatprep.subr.mxu0 0.0
    %107 = vmatpush1.msra.mxu0 0.0
    %108 = vmatprep.subr.mxu0 0.0
    %109 = vmatpush1.msra.mxu0 0.0
    %110 = vmatprep.subr.mxu0 0.0
    %111 = vmatpush1.msra.mxu0 0.0
    %112 = vmatprep.subr.mxu0 0.0
    %113 = vmatpush1.msra.mxu0 0.0
    %114 = vmatprep.subr.mxu0 0.0
    %115 = vmatpush1.msra.mxu0 0.0
    %116 = vmatprep.subr.mxu0 0.0
    %117 = vmatpush1.msra.mxu0 0.0
    %118 = vmatprep.subr.mxu0 0.0
    %119 = vmatpush1.msra.mxu0 0.0
    %120 = vmatprep.subr.mxu0 0.0
    %121 = vmatpush1.msra.mxu0 0.0
    %122 = vmatprep.subr.mxu0 0.0
    %123 = vmatpush1.msra.mxu0 0.0
    %124 = vmatprep.subr.mxu0 0.0
    %125 = vmatpush1.msra.mxu0 0.0
    %126 = vmatprep.subr.mxu0 0.0
    %127 = vmatpush1.msra.mxu0 0.0
    %128 = vmatprep.subr.mxu0 0.0
    %129 = vmatpush1.msra.mxu0 %v85
    %130 = vmatprep.subr.mxu0 0.0
    %131 = vmatpush1.msra.mxu0 %v84
    %132 = vmatprep.subr.mxu0 0.0
    %133 = vmatpush2.msra.mxu0 0.0
    %134 = vmatprep.subr.mxu0 0.0
    %135 = vmatpush2.msra.mxu0 0.0
    %136 = vmatprep.subr.mxu0 0.0
    %137 = vmatpush2.msra.mxu0 0.0
    %138 = vmatprep.subr.mxu0 0.0
    %139 = vmatpush2.msra.mxu0 0.0
    %140 = vmatprep.subr.mxu0 0.0
    %141 = vmatpush2.msra.mxu0 0.0
    %142 = vmatprep.subr.mxu0 0.0
    %143 = vmatpush2.msra.mxu0 0.0
    %144 = vmatprep.subr.mxu0 0.0
    %145 = vmatpush2.msra.mxu0 0.0
    %146 = vmatprep.subr.mxu0 0.0
    %147 = vmatpush2.msra.mxu0 0.0
    %148 = vmatprep.subr.mxu0 0.0
    %149 = vmatpush2.msra.mxu0 0.0
    %150 = vmatprep.subr.mxu0 0.0
    %151 = vmatpush2.msra.mxu0 0.0
    %152 = vmatprep.subr.mxu0 0.0
    %153 = vmatpush2.msra.mxu0 0.0
    %154 = vmatprep.subr.mxu0 0.0
    %155 = vmatpush2.msra.mxu0 0.0
    %156 = vmatprep.subr.mxu0 0.0
    %157 = vmatpush2.msra.mxu0 0.0
    %158 = vmatprep.subr.mxu0 0.0
    %159 = vmatpush2.msra.mxu0 0.0
    %160 = vmatprep.subr.mxu0 0.0
    %161 = vmatpush2.msra.mxu0 0.0
    %162 = vmatprep.subr.mxu0 0.0
    %163 = vmatpush2.msra.mxu0 0.0
    %164 = vmatprep.mubr.f32.mxu0 0.0
    %165 = vmatmul.mubr.f32.gmra.mxu0 %v95
    %v166 = vpop.f32.mrf.mxu0
    %v167 = vadd.f32 %v91, %v166
    %v168 = vpop.f32.mrf.mxu0
    %169 = vmatprep.mubr.f32.mxu0 0.0
    %170 = vmatmul.mubr.f32.gmra.mxu0 %v98
    %v171 = vpop.f32.mrf.mxu0
    %v172 = vadd.f32 %v91, %v171
    %v173 = vpop.f32.mrf.mxu0
    %174 = vdwg.mxu0
    %v175 = vtanh.pop %v167
    %v176 = vtanh.pop %v172
    %v177 = vld [vmem:[#allocation7] sm:$0xff]
    %v178 = vld [vmem:[#allocation7 + $0x8] sm:$0xff]
    %v179 = vld [vmem:[#allocation7 + $0x10] sm:$0xff]
    %v180 = vld [vmem:[#allocation7 + $0x18] sm:$0xff]
    %v181 = vld [vmem:[%s4] sm:$0x1]
    %v183 = vlaneseq
    %v184 = vshrl.u32 %v183, 7
    %v185 = vsub.s32 0, %v184
    %v186 = vrot.slane %v181, %v185
    %vm188 = vcmask 261120
    %v190 = vsel %vm188, %v175, 0
    %v193 = vsel %vm188, %v176, 0
    %195 = vmatprep.subr.mxu0 0.0
    %196 = vmatpush1.msra.mxu0 0.0
    %197 = vmatprep.subr.mxu0 0.0
    %198 = vmatpush1.msra.mxu0 0.0
    %199 = vmatprep.subr.mxu0 0.0
    %200 = vmatpush1.msra.mxu0 0.0
    %201 = vmatprep.subr.mxu0 0.0
    %202 = vmatpush1.msra.mxu0 0.0
    %203 = vmatprep.subr.mxu0 0.0
    %204 = vmatpush1.msra.mxu0 0.0
    %205 = vmatprep.subr.mxu0 0.0
    %206 = vmatpush1.msra.mxu0 0.0
    %207 = vmatprep.subr.mxu0 0.0
    %208 = vmatpush1.msra.mxu0 0.0
    %209 = vmatprep.subr.mxu0 0.0
    %210 = vmatpush1.msra.mxu0 0.0
    %211 = vmatprep.subr.mxu0 0.0
    %212 = vmatpush1.msra.mxu0 0.0
    %213 = vmatprep.subr.mxu0 0.0
    %214 = vmatpush1.msra.mxu0 0.0
    %215 = vmatprep.subr.mxu0 0.0
    %216 = vmatpush1.msra.mxu0 0.0
    %217 = vmatprep.subr.mxu0 0.0
    %218 = vmatpush1.msra.mxu0 0.0
    %219 = vmatprep.subr.mxu0 0.0
    %220 = vmatpush1.msra.mxu0 %v180
    %221 = vmatprep.subr.mxu0 0.0
    %222 = vmatpush1.msra.mxu0 %v179
    %223 = vmatprep.subr.mxu0 0.0
    %224 = vmatpush1.msra.mxu0 %v178
    %225 = vmatprep.subr.mxu0 0.0
    %226 = vmatpush1.msra.mxu0 %v177
    %227 = vmatprep.subr.mxu0 0.0
    %228 = vmatpush2.msra.mxu0 0.0
    %229 = vmatprep.subr.mxu0 0.0
    %230 = vmatpush2.msra.mxu0 0.0
    %231 = vmatprep.subr.mxu0 0.0
    %232 = vmatpush2.msra.mxu0 0.0
    %233 = vmatprep.subr.mxu0 0.0
    %234 = vmatpush2.msra.mxu0 0.0
    %235 = vmatprep.subr.mxu0 0.0
    %236 = vmatpush2.msra.mxu0 0.0
    %237 = vmatprep.subr.mxu0 0.0
    %238 = vmatpush2.msra.mxu0 0.0
    %239 = vmatprep.subr.mxu0 0.0
    %240 = vmatpush2.msra.mxu0 0.0
    %241 = vmatprep.subr.mxu0 0.0
    %242 = vmatpush2.msra.mxu0 0.0
    %243 = vmatprep.subr.mxu0 0.0
    %244 = vmatpush2.msra.mxu0 0.0
    %245 = vmatprep.subr.mxu0 0.0
    %246 = vmatpush2.msra.mxu0 0.0
    %247 = vmatprep.subr.mxu0 0.0
    %248 = vmatpush2.msra.mxu0 0.0
    %249 = vmatprep.subr.mxu0 0.0
    %250 = vmatpush2.msra.mxu0 0.0
    %251 = vmatprep.subr.mxu0 0.0
    %252 = vmatpush2.msra.mxu0 0.0
    %253 = vmatprep.subr.mxu0 0.0
    %254 = vmatpush2.msra.mxu0 0.0
    %255 = vmatprep.subr.mxu0 0.0
    %256 = vmatpush2.msra.mxu0 0.0
    %257 = vmatprep.subr.mxu0 0.0
    %258 = vmatpush2.msra.mxu0 0.0
    %259 = vmatprep.mubr.f32.mxu0 0.0
    %260 = vmatmul.mubr.f32.gmra.mxu0 %v190
    %v261 = vpop.f32.mrf.mxu0
    %v262 = vadd.f32 %v186, %v261
    %v263 = vpop.f32.mrf.mxu0
    %264 = vmatprep.mubr.f32.mxu0 0.0
    %265 = vmatmul.mubr.f32.gmra.mxu0 %v193
    %v266 = vpop.f32.mrf.mxu0
    %v267 = vadd.f32 %v186, %v266
    %v268 = vpop.f32.mrf.mxu0
    %269 = vdwg.mxu0
    %v270 = vtanh.pop %v262
    %v271 = vtanh.pop %v267
    %v272 = vld [vmem:[#allocation8] sm:$0xff]
    %v273 = vld [vmem:[#allocation8 + $0x8] sm:$0xff]
    %v274 = vld [vmem:[#allocation8 + $0x10] sm:$0xff]
    %v275 = vld [vmem:[#allocation8 + $0x18] sm:$0xff]
    %v276 = vld [vmem:[%s6] sm:$0x1]
    %v278 = vlaneseq
    %v279 = vshrl.u32 %v278, 7
    %v280 = vsub.s32 0, %v279
    %v281 = vrot.slane %v276, %v280
    %v284 = vsel %vm188, %v270, 0
    %v287 = vsel %vm188, %v271, 0
    %289 = vmatprep.subr.mxu0 0.0
    %290 = vmatpush1.msra.mxu0 0.0
    %291 = vmatprep.subr.mxu0 0.0
    %292 = vmatpush1.msra.mxu0 0.0
    %293 = vmatprep.subr.mxu0 0.0
    %294 = vmatpush1.msra.mxu0 0.0
    %295 = vmatprep.subr.mxu0 0.0
    %296 = vmatpush1.msra.mxu0 0.0
    %297 = vmatprep.subr.mxu0 0.0
    %298 = vmatpush1.msra.mxu0 0.0
    %299 = vmatprep.subr.mxu0 0.0
    %300 = vmatpush1.msra.mxu0 0.0
    %301 = vmatprep.subr.mxu0 0.0
    %302 = vmatpush1.msra.mxu0 0.0
    %303 = vmatprep.subr.mxu0 0.0
    %304 = vmatpush1.msra.mxu0 0.0
    %305 = vmatprep.subr.mxu0 0.0
    %306 = vmatpush1.msra.mxu0 0.0
    %307 = vmatprep.subr.mxu0 0.0
    %308 = vmatpush1.msra.mxu0 0.0
    %309 = vmatprep.subr.mxu0 0.0
    %310 = vmatpush1.msra.mxu0 0.0
    %311 = vmatprep.subr.mxu0 0.0
    %312 = vmatpush1.msra.mxu0 0.0
    %313 = vmatprep.subr.mxu0 0.0
    %314 = vmatpush1.msra.mxu0 %v275
    %315 = vmatprep.subr.mxu0 0.0
    %316 = vmatpush1.msra.mxu0 %v274
    %317 = vmatprep.subr.mxu0 0.0
    %318 = vmatpush1.msra.mxu0 %v273
    %319 = vmatprep.subr.mxu0 0.0
    %320 = vmatpush1.msra.mxu0 %v272
    %321 = vmatprep.subr.mxu0 0.0
    %322 = vmatpush2.msra.mxu0 0.0
    %323 = vmatprep.subr.mxu0 0.0
    %324 = vmatpush2.msra.mxu0 0.0
    %325 = vmatprep.subr.mxu0 0.0
    %326 = vmatpush2.msra.mxu0 0.0
    %327 = vmatprep.subr.mxu0 0.0
    %328 = vmatpush2.msra.mxu0 0.0
    %329 = vmatprep.subr.mxu0 0.0
    %330 = vmatpush2.msra.mxu0 0.0
    %331 = vmatprep.subr.mxu0 0.0
    %332 = vmatpush2.msra.mxu0 0.0
    %333 = vmatprep.subr.mxu0 0.0
    %334 = vmatpush2.msra.mxu0 0.0
    %335 = vmatprep.subr.mxu0 0.0
    %336 = vmatpush2.msra.mxu0 0.0
    %337 = vmatprep.subr.mxu0 0.0
    %338 = vmatpush2.msra.mxu0 0.0
    %339 = vmatprep.subr.mxu0 0.0
    %340 = vmatpush2.msra.mxu0 0.0
    %341 = vmatprep.subr.mxu0 0.0
    %342 = vmatpush2.msra.mxu0 0.0
    %343 = vmatprep.subr.mxu0 0.0
    %344 = vmatpush2.msra.mxu0 0.0
    %345 = vmatprep.subr.mxu0 0.0
    %346 = vmatpush2.msra.mxu0 0.0
    %347 = vmatprep.subr.mxu0 0.0
    %348 = vmatpush2.msra.mxu0 0.0
    %349 = vmatprep.subr.mxu0 0.0
    %350 = vmatpush2.msra.mxu0 0.0
    %351 = vmatprep.subr.mxu0 0.0
    %352 = vmatpush2.msra.mxu0 0.0
    %353 = vmatprep.mubr.f32.mxu0 0.0
    %354 = vmatmul.mubr.f32.gmra.mxu0 %v284
    %v355 = vpop.f32.mrf.mxu0
    %v356 = vadd.f32 %v281, %v355
    %v357 = vpop.f32.mrf.mxu0
    %358 = vmatprep.mubr.f32.mxu0 0.0
    %359 = vmatmul.mubr.f32.gmra.mxu0 %v287
    %v360 = vpop.f32.mrf.mxu0
    %v361 = vadd.f32 %v281, %v360
    %v362 = vpop.f32.mrf.mxu0
    %363 = vdwg.mxu0
    %364 = vst [vmem:[#allocation10] sm:$0xff] %v356
    %365 = vst [vmem:[#allocation10 + $0x8] sm:$0xff] %v361
    // Predicated region
    $region46: #{tpu_custom_call.1} parent=1 // pred_check
      _
    $region47: #{tpu_custom_call.1} parent=1 // pred_check_branch
      %367 = sbr.rel (0) target = $region49
    $region48: #{tpu_custom_call.1} parent=1 // pred_region
      %s369 = ssub.s32 256, 256
      %370 = vsyncadd [#allocation4], %s369
      %s371 = sshll.u32 [#allocation10], 4
      %s372 = int_to_ptr.vmem [resolvable:$true] %s371
      %377 = dma.vmem_to_hbm [thread:$0]  %s372, 256, %s7, [#allocation4], 128, 128, 8
    $region49: #{tpu_custom_call.1} parent=1 // pred_fallthru
      _
    // Predicated region
    $region50: #{tpu_custom_call.1} parent=1 // pred_check
      _
    $region51: #{tpu_custom_call.1} parent=1 // pred_check_branch
      %379 = sbr.rel (0) target = $region53
    $region52: #{tpu_custom_call.1} parent=1 // pred_region
      %380 = dma.done [#allocation4], 256
    $region53: #{tpu_custom_call.1} parent=1 // pred_fallthru
      _
    %381 = vsyncpa [#allocation3], 1
    %382 = vsyncpa [#allocation6], 1
    %383 = vsyncpa [#allocation9], 1
    %384 = vsyncpa [#allocation4], 1

</llo_original>
